<compile_context>
chip_gen: v7x
topology: tpu7x:2x2x1
jax: 0.10.0
libtpu: 0.0.40
codegen_flags: <defaults>
</compile_context>

<pallas_src>
import jax
import jax.numpy as jnp
from jax.experimental import pallas as pl
from jax.experimental.pallas import tpu as pltpu

GROUPS = 6


def _grouped_linear_kernel(x_ref, w_ref, b_ref, o_ref):
    # x_ref: (tm, Cin)   this tile's tokens, natural channel-last layout.
    # w_ref: (Cin, Cout) block-diagonal dense weight (VMEM-resident, all steps).
    # b_ref: (1, Cout)   bias row.
    # o_ref: (tm, Cout)  this tile's outputs.
    acc = jnp.dot(x_ref[...], w_ref[...], preferred_element_type=jnp.float32)
    acc = acc + b_ref[...].astype(jnp.float32)
    o_ref[...] = acc.astype(o_ref.dtype)


def grouped_linear(x, weight, bias, *, groups=GROUPS, tm=8192):
    """Forward of GroupedLinear: grouped 1x1 conv over the last dim of (B, N, Cin)."""
    B, N, Cin = x.shape
    Cout, Kg = weight.shape
    assert Cin % groups == 0 and Cout % groups == 0 and Kg == Cin // groups
    G = groups
    Ng = Cout // G
    M = B * N
    itemsize = jnp.dtype(x.dtype).itemsize

    # --- Token-tile selection ------------------------------------------------
    # Cap tm so double-buffered x+y tiles stay <= ~24 MiB (fits v7x's 64 MiB
    # physical / 32 MiB default-scoped VMEM with headroom).
    vmem_tile_budget = 24 << 20
    tm_cap = max(256, vmem_tile_budget // (2 * (Cin + Cout) * itemsize))
    tm = min(tm, tm_cap)
    if tm >= M:
        tm = M                     # single tile, equal to full dim: always legal
    else:
        tm = max(256, (tm // 256) * 256)   # multiple of 8 (sublane) and then some

    # --- Layout plumbing (all free / tiny) ----------------------------------
    # x: (B, N, Cin) -> (M, Cin)   (free reshape, no transpose)
    xm = x.reshape(M, Cin)
    # Block-diagonal dense weight (Cin, Cout): group g's (Kg, Ng) block is
    # weight[g].T on the diagonal, zeros elsewhere.  Built once; tiny.
    wg = weight.reshape(G, Ng, Kg)                      # (G, Ng, Kg)
    blocks = jnp.transpose(wg, (0, 2, 1))               # (G, Kg, Ng)
    eye = jnp.eye(G, dtype=weight.dtype)                # (G, G)
    w_bd = (eye[:, None, :, None] * blocks[:, :, None, :]).reshape(Cin, Cout)
    b_row = bias.reshape(1, Cout)

    num_tiles = pl.cdiv(M, tm)

    # --- VMEM limit & cost estimate ------------------------------------------
    tile_bytes = tm * (Cin + Cout) * itemsize            # one x tile + one y tile
    const_bytes = (Cin * Cout + Cout) * itemsize         # weight + bias
    vmem_limit = int(min(2 * tile_bytes + const_bytes + (8 << 20), 64 << 20))
    vmem_limit = max(vmem_limit, 16 << 20)

    cost = pl.CostEstimate(
        flops=2 * M * Cin * Cout,                        # dense work presented to MXU
        bytes_accessed=M * (Cin + Cout) * itemsize + const_bytes,
        transcendentals=0,
    )

    out = pl.pallas_call(
        _grouped_linear_kernel,
        out_shape=jax.ShapeDtypeStruct((M, Cout), x.dtype),
        grid_spec=pl.GridSpec(
            grid=(num_tiles,),
            in_specs=[
                pl.BlockSpec((tm, Cin), lambda m: (m, 0)),
                pl.BlockSpec((Cin, Cout), lambda m: (0, 0)),   # VMEM-resident
                pl.BlockSpec((1, Cout), lambda m: (0, 0)),     # VMEM-resident
            ],
            out_specs=pl.BlockSpec((tm, Cout), lambda m: (m, 0)),
        ),
        compiler_params=pltpu.CompilerParams(
            dimension_semantics=("parallel",),
            vmem_limit_bytes=vmem_limit,
        ),
        cost_estimate=cost,
    )(xm, w_bd, b_row)

    # (M, Cout) -> (B, N, Cout)   (free reshape)
    return out.reshape(B, N, Cout)


def grouped_linear_ref(x, weight, bias, groups=GROUPS):
    """Plain-JAX reference for correctness checking."""
    B, N, Cin = x.shape
    Cout, Kg = weight.shape
    Ng = Cout // groups
    xg = x.reshape(B, N, groups, Kg)
    wg = weight.reshape(groups, Ng, Kg)
    out = jnp.einsum("bngk,gok->bngo", xg, wg,
                     preferred_element_type=jnp.float32)
    out = out + bias.reshape(groups, Ng)
    return out.reshape(B, N, Cout).astype(x.dtype)


if __name__ == "__main__":
    key = jax.random.PRNGKey(0)
    kx, kw, kb, kx2 = jax.random.split(key, 4)

    # Small shapes consistent with the module: token grid (B, N), channel-last,
    # channel counts divisible by groups=6.
    B, N = 2, 64
    Cin, Cout = 24, 48            # Kg = 4, Ng = 8 per group
    x = jax.random.normal(kx, (B, N, Cin), dtype=jnp.float32)

    # Module init: trunc_normal(std=0.02) weights, zero bias (conv weight
    # (Cout, Cin//6, 1, 1) with the kernel-size-1 dims squeezed to (Cout, Kg)).
    weight = 0.02 * jax.random.truncated_normal(
        kw, -2.0, 2.0, (Cout, Cin // GROUPS), dtype=jnp.float32)
    bias = jnp.zeros((Cout,), dtype=jnp.float32)

    out = jax.block_until_ready(grouped_linear(x, weight, bias))
    ref = grouped_linear_ref(x, weight, bias)
    assert out.shape == (B, N, Cout) and out.dtype == x.dtype
    assert jnp.allclose(out, ref, atol=1e-3, rtol=1e-2), float(
        jnp.max(jnp.abs(out - ref)))

    # Exercise the bias path as well (module inits bias to zero, but the
    # forward must still add it correctly).
    bias2 = 0.1 * jax.random.normal(kb, (Cout,), dtype=jnp.float32)
    out2 = jax.block_until_ready(grouped_linear(x, weight, bias2))
    ref2 = grouped_linear_ref(x, weight, bias2)
    assert jnp.allclose(out2, ref2, atol=1e-3, rtol=1e-2), float(
        jnp.max(jnp.abs(out2 - ref2)))

    # Exercise the tiled / ragged-M path (multiple grid steps, last tile ragged).
    B3, N3 = 2, 200               # M = 400, tm=256 -> tiles of 256 + ragged 144
    x3 = jax.random.normal(kx2, (B3, N3, Cin), dtype=jnp.float32)
    out3 = jax.block_until_ready(grouped_linear(x3, weight, bias2, tm=256))
    ref3 = grouped_linear_ref(x3, weight, bias2)
    assert jnp.allclose(out3, ref3, atol=1e-3, rtol=1e-2), float(
        jnp.max(jnp.abs(out3 - ref3)))

    print("KERNEL_OK")
</pallas_src>

<mosaic_0001>
module attributes {stable_mosaic.version = 11 : i64} {
  func.func @_grouped_linear_kernel(%arg0: i32, %arg1: memref<128x24xf32, #tpu.memory_space<vmem>>, %arg2: memref<24x48xf32, #tpu.memory_space<vmem>>, %arg3: memref<1x48xf32, #tpu.memory_space<vmem>>, %arg4: memref<128x48xf32, #tpu.memory_space<vmem>>) attributes {dimension_semantics = [#tpu.dimension_semantics<parallel>], iteration_bounds = array<i64: 1>, scalar_prefetch = 0 : i64, scratch_operands = 0 : i64, tpu.core_type = #tpu.core_type<tc>, window_params = [{transform_indices = @transform_0, window_bounds = array<i64: 128, 24>}, {pipeline_mode = #tpu.pipeline_mode<synchronous>, transform_indices = @transform_1, window_bounds = array<i64: 24, 48>}, {pipeline_mode = #tpu.pipeline_mode<synchronous>, transform_indices = @transform_2, window_bounds = array<i64: 1, 48>}, {transform_indices = @transform_3, window_bounds = array<i64: 128, 48>}]} {
    %c0 = arith.constant 0 : index
    %c0_0 = arith.constant 0 : index
    %0 = vector.load %arg1[%c0, %c0_0] : memref<128x24xf32, #tpu.memory_space<vmem>>, vector<128x24xf32>
    %c0_1 = arith.constant 0 : index
    %c0_2 = arith.constant 0 : index
    %1 = vector.load %arg2[%c0_1, %c0_2] : memref<24x48xf32, #tpu.memory_space<vmem>>, vector<24x48xf32>
    %cst = arith.constant dense<0.000000e+00> : vector<128x48xf32>
    %2 = tpu.matmul %0, %1, %cst {dimension_numbers = #tpu.dot_dimension_numbers<[1], [0], [0], [1], [0, 0, 1, 1], [], []>} : vector<128x24xf32>, vector<24x48xf32>, vector<128x48xf32> -> vector<128x48xf32>
    %c0_3 = arith.constant 0 : index
    %c0_4 = arith.constant 0 : index
    %3 = vector.load %arg3[%c0_3, %c0_4] : memref<1x48xf32, #tpu.memory_space<vmem>>, vector<1x48xf32>
    %4 = vector.broadcast %3 : vector<1x48xf32> to vector<128x48xf32>
    %5 = arith.addf %2, %4 : vector<128x48xf32>
    %c0_5 = arith.constant 0 : index
    %c0_6 = arith.constant 0 : index
    %6 = vector.load %arg4[%c0_5, %c0_6] : memref<128x48xf32, #tpu.memory_space<vmem>>, vector<128x48xf32>
    tpu.vector_store %arg4[%c0_5, %c0_6], %5 {strides = array<i32>} : memref<128x48xf32, #tpu.memory_space<vmem>>, vector<128x48xf32>,
    return
  }
  func.func @transform_0(%arg0: i32) -> (i32, i32) {
    %c0_i32 = arith.constant 0 : i32
    %c0_i32_0 = arith.constant 0 : i32
    return %arg0, %c0_i32 : i32, i32
  }
  func.func @transform_1(%arg0: i32) -> (i32, i32) {
    %c0_i32 = arith.constant 0 : i32
    %c0_i32_0 = arith.constant 0 : i32
    %c0_i32_1 = arith.constant 0 : i32
    return %c0_i32, %c0_i32_0 : i32, i32
  }
  func.func @transform_2(%arg0: i32) -> (i32, i32) {
    %c0_i32 = arith.constant 0 : i32
    %c0_i32_0 = arith.constant 0 : i32
    %c0_i32_1 = arith.constant 0 : i32
    return %c0_i32, %c0_i32_0 : i32, i32
  }
  func.func @transform_3(%arg0: i32) -> (i32, i32) {
    %c0_i32 = arith.constant 0 : i32
    %c0_i32_0 = arith.constant 0 : i32
    return %arg0, %c0_i32 : i32, i32
  }
}

</mosaic_0001>

<llo_original>
// kernel: tpu_custom_call.1
$region0: #{tpu_custom_call.1}
  #allocation0 [shape = 'u32[]', space=smem, size = 0x4, offset = 0x4, fixed_abs, tag = 'smem constant byte address 0x4 - core index']
  #allocation1 [shape = 'u32[144,128]{1,0:T(1,128)}', space=vmem, size = 0x12000, scoped, tag = 'internal scratch']
  %s0 = inlined_call_operand.vmem [shape: f32[128,24], index: 0, kind: input, shape index: {}]
  %s1 = inlined_call_operand.vmem [shape: f32[24,48], index: 1, kind: input, shape index: {}]
  %s2 = inlined_call_operand.vmem [shape: f32[1,48], index: 2, kind: input, shape index: {}]
  %s3 = inlined_call_operand.vmem [shape: f32[128,48], index: 3, kind: output, shape index: {}]
  %s4 = sld [smem:[#allocation0]]
  $region22: #{tpu_custom_call.1} parent=0
    _
  %s6 = ssub.s32 1, %s4
  %s7 = scalar_select 0, %s6, %s4
  // Predicated region
  $region2: #{tpu_custom_call.1} parent=0 // pred_check
    _
  $region3: #{tpu_custom_call.1} parent=0 // pred_check_branch
    %9 = sbr.rel (0) target = $region5
  $region4: #{tpu_custom_call.1} parent=0 // pred_region
    _
  $region5: #{tpu_custom_call.1} parent=0 // pred_fallthru
    _
  // Predicated region
  $region6: #{tpu_custom_call.1} parent=0 // pred_check
    _
  $region7: #{tpu_custom_call.1} parent=0 // pred_check_branch
    %11 = sbr.rel (0) target = $region9
  $region8: #{tpu_custom_call.1} parent=0 // pred_region
    _
  $region9: #{tpu_custom_call.1} parent=0 // pred_fallthru
    _
  // Predicated region
  $region10: #{tpu_custom_call.1} parent=0 // pred_check
    _
  $region11: #{tpu_custom_call.1} parent=0 // pred_check_branch
    %13 = sbr.rel (0) target = $region13
  $region12: #{tpu_custom_call.1} parent=0 // pred_region
    _
  $region13: #{tpu_custom_call.1} parent=0 // pred_fallthru
    _
  %v14 = vld [vmem:[%s0] sm:$0xff]
  %v15 = vld [vmem:[%s0 + $0x8] sm:$0xff]
  %v16 = vld [vmem:[%s0 + $0x10] sm:$0xff]
  %v17 = vld [vmem:[%s0 + $0x18] sm:$0xff]
  %v18 = vld [vmem:[%s0 + $0x20] sm:$0xff]
  %v19 = vld [vmem:[%s0 + $0x28] sm:$0xff]
  %v20 = vld [vmem:[%s0 + $0x30] sm:$0xff]
  %v21 = vld [vmem:[%s0 + $0x38] sm:$0xff]
  %v22 = vld [vmem:[%s0 + $0x40] sm:$0xff]
  %v23 = vld [vmem:[%s0 + $0x48] sm:$0xff]
  %v24 = vld [vmem:[%s0 + $0x50] sm:$0xff]
  %v25 = vld [vmem:[%s0 + $0x58] sm:$0xff]
  %v26 = vld [vmem:[%s0 + $0x60] sm:$0xff]
  %v27 = vld [vmem:[%s0 + $0x68] sm:$0xff]
  %v28 = vld [vmem:[%s0 + $0x70] sm:$0xff]
  %v29 = vld [vmem:[%s0 + $0x78] sm:$0xff]
  %v30 = vld [vmem:[%s1] sm:$0xff]
  %v31 = vld [vmem:[%s1 + $0x8] sm:$0xff]
  %v32 = vld [vmem:[%s1 + $0x10] sm:$0xff]
  %v33 = vld [vmem:[%s2] sm:$0x1]
  %v35 = vlaneseq
  %v36 = vshrl.u32 %v35, 7
  %v37 = vsub.s32 0, %v36
  %v38 = vrot.slane %v33, %v37
  %vm40 = vcmask 195584
  %v42 = vsel %vm40, %v14, 0
  %v45 = vsel %vm40, %v15, 0
  %v48 = vsel %vm40, %v16, 0
  %v51 = vsel %vm40, %v17, 0
  %v54 = vsel %vm40, %v18, 0
  %v57 = vsel %vm40, %v19, 0
  %v60 = vsel %vm40, %v20, 0
  %v63 = vsel %vm40, %v21, 0
  %v66 = vsel %vm40, %v22, 0
  %v69 = vsel %vm40, %v23, 0
  %v72 = vsel %vm40, %v24, 0
  %v75 = vsel %vm40, %v25, 0
  %v78 = vsel %vm40, %v26, 0
  %v81 = vsel %vm40, %v27, 0
  %v84 = vsel %vm40, %v28, 0
  %v87 = vsel %vm40, %v29, 0
  %89 = vmatprep.subr.mxu0 0.0
  %90 = vmatpush1.msra.mxu0 %v30
  %91 = vmatprep.subr.mxu0 0.0
  %92 = vmatpush1.msra.mxu0 %v31
  %93 = vmatprep.subr.mxu0 0.0
  %94 = vmatpush1.msra.mxu0 %v32
  %95 = vmatprep.subr.mxu0 0.0
  %96 = vmatpush1.msra.mxu0 0.0
  %97 = vmatprep.subr.mxu0 0.0
  %98 = vmatpush1.msra.mxu0 0.0
  %99 = vmatprep.subr.mxu0 0.0
  %100 = vmatpush1.msra.mxu0 0.0
  %101 = vmatprep.subr.mxu0 0.0
  %102 = vmatpush1.msra.mxu0 0.0
  %103 = vmatprep.subr.mxu0 0.0
  %104 = vmatpush1.msra.mxu0 0.0
  %105 = vmatprep.subr.mxu0 0.0
  %106 = vmatpush1.msra.mxu0 0.0
  %107 = vmatprep.subr.mxu0 0.0
  %108 = vmatpush1.msra.mxu0 0.0
  %109 = vmatprep.subr.mxu0 0.0
  %110 = vmatpush1.msra.mxu0 0.0
  %111 = vmatprep.subr.mxu0 0.0
  %112 = vmatpush1.msra.mxu0 0.0
  %113 = vmatprep.subr.mxu0 0.0
  %114 = vmatpush1.msra.mxu0 0.0
  %115 = vmatprep.subr.mxu0 0.0
  %116 = vmatpush1.msra.mxu0 0.0
  %117 = vmatprep.subr.mxu0 0.0
  %118 = vmatpush1.msra.mxu0 0.0
  %119 = vmatprep.subr.mxu0 0.0
  %120 = vmatpush1.msra.mxu0 0.0
  %121 = vmatprep.subr.mxu0 0.0
  %122 = vmatpush1.msra.mxu0 0.0
  %123 = vmatprep.subr.mxu0 0.0
  %124 = vmatpush1.msra.mxu0 0.0
  %125 = vmatprep.subr.mxu0 0.0
  %126 = vmatpush1.msra.mxu0 0.0
  %127 = vmatprep.subr.mxu0 0.0
  %128 = vmatpush1.msra.mxu0 0.0
  %129 = vmatprep.subr.mxu0 0.0
  %130 = vmatpush1.msra.mxu0 0.0
  %131 = vmatprep.subr.mxu0 0.0
  %132 = vmatpush1.msra.mxu0 0.0
  %133 = vmatprep.subr.mxu0 0.0
  %134 = vmatpush1.msra.mxu0 0.0
  %135 = vmatprep.subr.mxu0 0.0
  %136 = vmatpush1.msra.mxu0 0.0
  %137 = vmatprep.subr.mxu0 0.0
  %138 = vmatpush1.msra.mxu0 0.0
  %139 = vmatprep.subr.mxu0 0.0
  %140 = vmatpush1.msra.mxu0 0.0
  %141 = vmatprep.subr.mxu0 0.0
  %142 = vmatpush1.msra.mxu0 0.0
  %143 = vmatprep.subr.mxu0 0.0
  %144 = vmatpush1.msra.mxu0 0.0
  %145 = vmatprep.subr.mxu0 0.0
  %146 = vmatpush1.msra.mxu0 0.0
  %147 = vmatprep.subr.mxu0 0.0
  %148 = vmatpush1.msra.mxu0 0.0
  %149 = vmatprep.subr.mxu0 0.0
  %150 = vmatpush1.msra.mxu0 0.0
  %151 = vmatprep.subr.mxu0 0.0
  %152 = vmatpush1.msra.mxu0 0.0
  %153 = vmatprep.mubr.f32.mxu0 0.0
  %154 = vmatmul.mubr.f32.gmra.mrb[0].mxu0 %v42
  %v155 = vpop.f32.mrb[0].mxu0
  %v156 = vadd.f32 %v38, %v155
  %v157 = vpop.f32.mrb[0].mxu0
  %158 = vmatprep.mubr.f32.mxu0 0.0
  %159 = vmatmul.mubr.f32.gmra.mrb[0].mxu0 %v45
  %v160 = vpop.f32.mrb[0].mxu0
  %v161 = vadd.f32 %v38, %v160
  %v162 = vpop.f32.mrb[0].mxu0
  %163 = vmatprep.mubr.f32.mxu0 0.0
  %164 = vmatmul.mubr.f32.gmra.mrb[0].mxu0 %v48
  %v165 = vpop.f32.mrb[0].mxu0
  %v166 = vadd.f32 %v38, %v165
  %v167 = vpop.f32.mrb[0].mxu0
  %168 = vmatprep.mubr.f32.mxu0 0.0
  %169 = vmatmul.mubr.f32.gmra.mrb[0].mxu0 %v51
  %v170 = vpop.f32.mrb[0].mxu0
  %v171 = vadd.f32 %v38, %v170
  %v172 = vpop.f32.mrb[0].mxu0
  %173 = vmatprep.mubr.f32.mxu0 0.0
  %174 = vmatmul.mubr.f32.gmra.mrb[0].mxu0 %v54
  %v175 = vpop.f32.mrb[0].mxu0
  %v176 = vadd.f32 %v38, %v175
  %v177 = vpop.f32.mrb[0].mxu0
  %178 = vmatprep.mubr.f32.mxu0 0.0
  %179 = vmatmul.mubr.f32.gmra.mrb[0].mxu0 %v57
  %v180 = vpop.f32.mrb[0].mxu0
  %v181 = vadd.f32 %v38, %v180
  %v182 = vpop.f32.mrb[0].mxu0
  %183 = vmatprep.mubr.f32.mxu0 0.0
  %184 = vmatmul.mubr.f32.gmra.mrb[0].mxu0 %v60
  %v185 = vpop.f32.mrb[0].mxu0
  %v186 = vadd.f32 %v38, %v185
  %v187 = vpop.f32.mrb[0].mxu0
  %188 = vmatprep.mubr.f32.mxu0 0.0
  %189 = vmatmul.mubr.f32.gmra.mrb[0].mxu0 %v63
  %v190 = vpop.f32.mrb[0].mxu0
  %v191 = vadd.f32 %v38, %v190
  %v192 = vpop.f32.mrb[0].mxu0
  %193 = vmatprep.mubr.f32.mxu0 0.0
  %194 = vmatmul.mubr.f32.gmra.mrb[0].mxu0 %v66
  %v195 = vpop.f32.mrb[0].mxu0
  %v196 = vadd.f32 %v38, %v195
  %v197 = vpop.f32.mrb[0].mxu0
  %198 = vmatprep.mubr.f32.mxu0 0.0
  %199 = vmatmul.mubr.f32.gmra.mrb[0].mxu0 %v69
  %v200 = vpop.f32.mrb[0].mxu0
  %v201 = vadd.f32 %v38, %v200
  %v202 = vpop.f32.mrb[0].mxu0
  %203 = vmatprep.mubr.f32.mxu0 0.0
  %204 = vmatmul.mubr.f32.gmra.mrb[0].mxu0 %v72
  %v205 = vpop.f32.mrb[0].mxu0
  %v206 = vadd.f32 %v38, %v205
  %v207 = vpop.f32.mrb[0].mxu0
  %208 = vmatprep.mubr.f32.mxu0 0.0
  %209 = vmatmul.mubr.f32.gmra.mrb[0].mxu0 %v75
  %v210 = vpop.f32.mrb[0].mxu0
  %v211 = vadd.f32 %v38, %v210
  %v212 = vpop.f32.mrb[0].mxu0
  %213 = vmatprep.mubr.f32.mxu0 0.0
  %214 = vmatmul.mubr.f32.gmra.mrb[0].mxu0 %v78
  %v215 = vpop.f32.mrb[0].mxu0
  %v216 = vadd.f32 %v38, %v215
  %v217 = vpop.f32.mrb[0].mxu0
  %218 = vmatprep.mubr.f32.mxu0 0.0
  %219 = vmatmul.mubr.f32.gmra.mrb[0].mxu0 %v81
  %v220 = vpop.f32.mrb[0].mxu0
  %v221 = vadd.f32 %v38, %v220
  %v222 = vpop.f32.mrb[0].mxu0
  %223 = vmatprep.mubr.f32.mxu0 0.0
  %224 = vmatmul.mubr.f32.gmra.mrb[0].mxu0 %v84
  %v225 = vpop.f32.mrb[0].mxu0
  %v226 = vadd.f32 %v38, %v225
  %v227 = vpop.f32.mrb[0].mxu0
  %228 = vmatprep.mubr.f32.mxu0 0.0
  %229 = vmatmul.mubr.f32.gmra.mrb[0].mxu0 %v87
  %v230 = vpop.f32.mrb[0].mxu0
  %v231 = vadd.f32 %v38, %v230
  %v232 = vpop.f32.mrb[0].mxu0
  %233 = vdwg.mxu0
  %vm234 = vcmask 392192
  %235 = vst.msk [vmem:[%s3] sm:$0xff] %vm234, %v156
  %236 = vst.msk [vmem:[%s3 + $0x8] sm:$0xff] %vm234, %v161
  %237 = vst.msk [vmem:[%s3 + $0x10] sm:$0xff] %vm234, %v166
  %238 = vst.msk [vmem:[%s3 + $0x18] sm:$0xff] %vm234, %v171
  %239 = vst.msk [vmem:[%s3 + $0x20] sm:$0xff] %vm234, %v176
  %240 = vst.msk [vmem:[%s3 + $0x28] sm:$0xff] %vm234, %v181
  %241 = vst.msk [vmem:[%s3 + $0x30] sm:$0xff] %vm234, %v186
  %242 = vst.msk [vmem:[%s3 + $0x38] sm:$0xff] %vm234, %v191
  %243 = vst.msk [vmem:[%s3 + $0x40] sm:$0xff] %vm234, %v196
  %244 = vst.msk [vmem:[%s3 + $0x48] sm:$0xff] %vm234, %v201
  %245 = vst.msk [vmem:[%s3 + $0x50] sm:$0xff] %vm234, %v206
  %246 = vst.msk [vmem:[%s3 + $0x58] sm:$0xff] %vm234, %v211
  %247 = vst.msk [vmem:[%s3 + $0x60] sm:$0xff] %vm234, %v216
  %248 = vst.msk [vmem:[%s3 + $0x68] sm:$0xff] %vm234, %v221
  %249 = vst.msk [vmem:[%s3 + $0x70] sm:$0xff] %vm234, %v226
  %250 = vst.msk [vmem:[%s3 + $0x78] sm:$0xff] %vm234, %v231
  // Predicated region
  $region14: #{tpu_custom_call.1} parent=0 // pred_check
    _
  $region15: #{tpu_custom_call.1} parent=0 // pred_check_branch
    %252 = sbr.rel (0) target = $region17
  $region16: #{tpu_custom_call.1} parent=0 // pred_region
    _
  $region17: #{tpu_custom_call.1} parent=0 // pred_fallthru
    _
  // Predicated region
  $region18: #{tpu_custom_call.1} parent=0 // pred_check
    _
  $region19: #{tpu_custom_call.1} parent=0 // pred_check_branch
    %254 = sbr.rel (0) target = $region21
  $region20: #{tpu_custom_call.1} parent=0 // pred_region
    _
  $region21: #{tpu_custom_call.1} parent=0 // pred_fallthru
    _

</llo_original>
